<compile_context>
chip_gen: v7x
topology: tpu7x:2x2x1
jax: 0.10.0
libtpu: 0.0.40
codegen_flags: <defaults>
</compile_context>

<pallas_src>
import jax
import jax.numpy as jnp
import numpy as np
from jax.experimental import pallas as pl
from jax.experimental.pallas import tpu as pltpu


# ----------------------------- config ---------------------------------------
BATCH = 8
CHANNELS = 4
SPATIAL = 16
REP_DIM = 128          # resnet.rep_dim
EMBEDDING_DIM = 64
FEATURE_DIM = 128      # feature_dim
CLASS_NUM = 10         # class_num
CLASS_PAD = 128        # lane-dense padded width for the cluster head
NEG_INF = -1e30        # finite! (-inf would poison the row max)


# ----------------------------- fused kernel ----------------------------------
def fused_kernel(pooled_ref, e_ref,
                 w_b_ref, b_b_ref,
                 w_emb_ref, b_emb_ref,
                 w_ic1_ref, b_ic1_ref,
                 w_tail_ref, b_tail_ref,
                 z_ref, c_ref):
    """Single grid step over the stacked (x_i ++ x_j) batch; all heads fused."""
    nb = pooled_ref.shape[0]                    # 2*B
    rep = w_b_ref.shape[1]

    # ---- surrogate backbone tail: relu(pooled @ W_b + b_b) ---------------
    # K = C = 4, so a 4-term VPU FMA chain beats an MXU fill.
    pooled = pooled_ref[...]                    # (2B, C)
    h = jnp.zeros((nb, rep), jnp.float32) + b_b_ref[...]
    for k in range(pooled.shape[1]):            # C is small and static
        h = h + pooled[:, k:k + 1] * w_b_ref[k:k + 1, :]
    h = jnp.maximum(h, 0.0)

    # ---- embedding_layer: relu([h | e_pad] @ W_emb_packed + b) -----------
    # e_ref is zero-padded to 128 lanes wrapper-side; W_emb_packed is
    # vstack(w_emb_h, pad(w_emb_e)) -> (2*rep, rep).  Single MXU push.
    he = jnp.concatenate([h, e_ref[...]], axis=1)            # (2B, 2*rep)
    g = jnp.dot(he, w_emb_ref[...], preferred_element_type=jnp.float32) + b_emb_ref[...]
    g = jnp.maximum(g, 0.0)

    # ---- fused first projector layers: one (rep -> 2*rep) matmul ---------
    tu = jnp.dot(g, w_ic1_ref[...], preferred_element_type=jnp.float32) + b_ic1_ref[...]
    tu = jnp.maximum(tu, 0.0)                                 # (2B, 2*rep) = [t | u]

    # ---- fused block-diagonal tail: [t | u] @ blockdiag(w_i2, w_c2_pad) --
    out = jnp.dot(tu, w_tail_ref[...], preferred_element_type=jnp.float32) + b_tail_ref[...]

    # ---- instance branch + F.normalize(dim=1) -----------------------------
    z = out[:, :FEATURE_DIM]
    sumsq = jnp.sum(z * z, axis=1, keepdims=True)
    # rsqrt(max(sumsq, 1e-24)) == 1 / max(||z||, 1e-12)  (matches F.normalize)
    z_ref[...] = z * jax.lax.rsqrt(jnp.maximum(sumsq, 1e-24))

    # ---- cluster branch + Softmax(dim=1), lane-dense (padded) -------------
    logits = out[:, FEATURE_DIM:]                             # pad lanes are -1e30
    m = jnp.max(logits, axis=1, keepdims=True)
    p = jnp.exp(logits - m)                                   # -> exactly 0 on pads
    c_ref[...] = p / jnp.sum(p, axis=1, keepdims=True)        # exact divide (free here)


# ----------------------------- wrappers --------------------------------------
def _full_spec(shape):
    """Full-array block (single grid step)."""
    n = len(shape)
    return pl.BlockSpec(shape, lambda i, n=n: (0,) * n)


def pack_params(p):
    """One-time weight packing for the fused kernel."""
    # embedding layer: [w_emb_h ; pad(w_emb_e)] -> (2*rep, rep)
    w_emb_e_pad = jnp.pad(p["w_emb_e"], ((0, REP_DIM - EMBEDDING_DIM), (0, 0)))
    w_emb = jnp.concatenate([p["w_emb_h"], w_emb_e_pad], axis=0)

    # lane-dense cluster head: zero weight cols, large-negative bias on pads
    w_c2_pad = jnp.pad(p["w_c2"], ((0, 0), (0, CLASS_PAD - CLASS_NUM)))
    b_c2_pad = jnp.pad(p["b_c2"], ((0, 0), (0, CLASS_PAD - CLASS_NUM)),
                       constant_values=NEG_INF)

    # block-diagonal tail: blockdiag(w_i2, w_c2_pad) -> (2*rep, FEATURE+CLASS_PAD)
    w_tail = jnp.concatenate(
        [jnp.concatenate([p["w_i2"], jnp.zeros((REP_DIM, CLASS_PAD), jnp.float32)], axis=1),
         jnp.concatenate([jnp.zeros((REP_DIM, FEATURE_DIM), jnp.float32), w_c2_pad], axis=1)],
        axis=0)
    b_tail = jnp.concatenate([p["b_i2"], b_c2_pad], axis=1)

    return {
        "w_b": p["w_backbone"],
        "b_b": p["b_backbone"],
        "w_emb": w_emb,
        "b_emb": p["b_emb"],
        "w_ic1": jnp.concatenate([p["w_i1"], p["w_c1"]], axis=1),   # (rep, 2*rep)
        "b_ic1": jnp.concatenate([p["b_i1"], p["b_c1"]], axis=1),   # (1, 2*rep)
        "w_tail": w_tail,
        "b_tail": b_tail,
    }


@jax.jit
def t_network_forward(x_i, x_j, embedding_v, kp):
    B, C, H, W = x_i.shape
    hw = H * W

    # Fold the (i, j) pair into the batch; hoist the surrogate GAP to the
    # wrapper (fuses with the concat/pad into one tiny XLA op) so the kernel's
    # non-weight input DMA is (2B, C) instead of the raw pixels.
    x = jnp.concatenate([x_i, x_j], axis=0)                       # (2B, C, H, W)
    pooled = jnp.mean(x.reshape(2 * B, C, hw), axis=2)            # (2B, C)
    e_pad = jnp.pad(embedding_v, ((0, 0), (0, REP_DIM - EMBEDDING_DIM)))
    e2 = jnp.concatenate([e_pad, e_pad], axis=0)                  # (2B, rep)

    weight_args = (kp["w_b"], kp["b_b"],
                   kp["w_emb"], kp["b_emb"],
                   kp["w_ic1"], kp["b_ic1"],
                   kp["w_tail"], kp["b_tail"])

    in_specs = ([_full_spec(pooled.shape), _full_spec(e2.shape)]
                + [_full_spec(a.shape) for a in weight_args])

    z, c_pad = pl.pallas_call(
        fused_kernel,
        out_shape=(jax.ShapeDtypeStruct((2 * B, FEATURE_DIM), jnp.float32),
                   jax.ShapeDtypeStruct((2 * B, CLASS_PAD), jnp.float32)),
        grid=(1,),
        in_specs=in_specs,
        out_specs=(_full_spec((2 * B, FEATURE_DIM)),
                   _full_spec((2 * B, CLASS_PAD))),
        compiler_params=pltpu.CompilerParams(dimension_semantics=("arbitrary",)),
    )(pooled, e2, *weight_args)

    z_i, z_j = z[:B], z[B:]
    c_i = c_pad[:B, :CLASS_NUM]
    c_j = c_pad[B:, :CLASS_NUM]
    return z_i, z_j, c_i, c_j


# ----------------------------- reference (plain JAX) -------------------------
def _ref_forward(x_i, x_j, embedding_v, p):
    def backbone_ref(x):
        pooled = jnp.mean(x.reshape(x.shape[0], x.shape[1], -1), axis=2)
        return jnp.maximum(pooled @ p["w_backbone"] + p["b_backbone"], 0.0)

    def heads_ref(h, e):
        g = jnp.maximum(h @ p["w_emb_h"] + e @ p["w_emb_e"] + p["b_emb"], 0.0)
        t = jnp.maximum(g @ p["w_i1"] + p["b_i1"], 0.0)
        z = t @ p["w_i2"] + p["b_i2"]
        z = z / jnp.maximum(jnp.linalg.norm(z, axis=1, keepdims=True), 1e-12)
        u = jnp.maximum(g @ p["w_c1"] + p["b_c1"], 0.0)
        logits = u @ p["w_c2"] + p["b_c2"]
        c = jax.nn.softmax(logits, axis=1)
        return z, c

    h_i, h_j = backbone_ref(x_i), backbone_ref(x_j)
    z_i, c_i = heads_ref(h_i, embedding_v)
    z_j, c_j = heads_ref(h_j, embedding_v)
    return z_i, z_j, c_i, c_j


# ----------------------------- parameter init --------------------------------
def init_params(key):
    # Weights stored as (in_features, out_features) (i.e. PyTorch W.T).
    ks = jax.random.split(key, 16)

    def w(k, shape):
        fan_in = shape[0]
        return (jax.random.normal(k, shape, jnp.float32) / np.sqrt(fan_in)).astype(jnp.float32)

    def b(k, dim):
        return (0.01 * jax.random.normal(k, (1, dim), jnp.float32)).astype(jnp.float32)

    return {
        # surrogate resnet backbone
        "w_backbone": w(ks[0], (CHANNELS, REP_DIM)),
        "b_backbone": b(ks[1], REP_DIM),
        # embedding_layer: Linear(rep_dim + 64 -> rep_dim), split into two blocks
        "w_emb_h": w(ks[2], (REP_DIM, REP_DIM)),
        "w_emb_e": w(ks[3], (EMBEDDING_DIM, REP_DIM)),
        "b_emb": b(ks[4], REP_DIM),
        # instance_projector
        "w_i1": w(ks[5], (REP_DIM, REP_DIM)),
        "b_i1": b(ks[6], REP_DIM),
        "w_i2": w(ks[7], (REP_DIM, FEATURE_DIM)),
        "b_i2": b(ks[8], FEATURE_DIM),
        # cluster_projector
        "w_c1": w(ks[9], (REP_DIM, REP_DIM)),
        "b_c1": b(ks[10], REP_DIM),
        "w_c2": w(ks[11], (REP_DIM, CLASS_NUM)),
        "b_c2": b(ks[12], CLASS_NUM),
    }


# ----------------------------- main ------------------------------------------
if __name__ == "__main__":
    key = jax.random.PRNGKey(0)
    k_x1, k_x2, k_e, k_p = jax.random.split(key, 4)

    x_i = jax.random.normal(k_x1, (BATCH, CHANNELS, SPATIAL, SPATIAL), jnp.float32)
    x_j = jax.random.normal(k_x2, (BATCH, CHANNELS, SPATIAL, SPATIAL), jnp.float32)
    embedding_v = jax.random.normal(k_e, (BATCH, EMBEDDING_DIM), jnp.float32)

    params = init_params(k_p)
    kparams = pack_params(params)                    # one-time weight packing

    z_i, z_j, c_i, c_j = t_network_forward(x_i, x_j, embedding_v, kparams)
    jax.block_until_ready((z_i, z_j, c_i, c_j))

    # correctness check against plain-JAX reference
    rz_i, rz_j, rc_i, rc_j = _ref_forward(x_i, x_j, embedding_v, params)
    np.testing.assert_allclose(np.asarray(z_i), np.asarray(rz_i), rtol=1e-4, atol=2e-4)
    np.testing.assert_allclose(np.asarray(z_j), np.asarray(rz_j), rtol=1e-4, atol=2e-4)
    np.testing.assert_allclose(np.asarray(c_i), np.asarray(rc_i), rtol=1e-4, atol=1e-5)
    np.testing.assert_allclose(np.asarray(c_j), np.asarray(rc_j), rtol=1e-4, atol=1e-5)

    print("KERNEL_OK")
</pallas_src>

<mosaic_0001>
module attributes {stable_mosaic.version = 11 : i64} {
  func.func @fused_kernel(%arg0: i32, %arg1: memref<16x4xf32, #tpu.memory_space<vmem>>, %arg2: memref<16x128xf32, #tpu.memory_space<vmem>>, %arg3: memref<4x128xf32, #tpu.memory_space<vmem>>, %arg4: memref<1x128xf32, #tpu.memory_space<vmem>>, %arg5: memref<256x128xf32, #tpu.memory_space<vmem>>, %arg6: memref<1x128xf32, #tpu.memory_space<vmem>>, %arg7: memref<128x256xf32, #tpu.memory_space<vmem>>, %arg8: memref<1x256xf32, #tpu.memory_space<vmem>>, %arg9: memref<256x256xf32, #tpu.memory_space<vmem>>, %arg10: memref<1x256xf32, #tpu.memory_space<vmem>>, %arg11: memref<16x128xf32, #tpu.memory_space<vmem>>, %arg12: memref<16x128xf32, #tpu.memory_space<vmem>>) attributes {dimension_semantics = [#tpu.dimension_semantics<arbitrary>], iteration_bounds = array<i64: 1>, scalar_prefetch = 0 : i64, scratch_operands = 0 : i64, tpu.core_type = #tpu.core_type<tc>, window_params = [{pipeline_mode = #tpu.pipeline_mode<synchronous>, transform_indices = @transform_0, window_bounds = array<i64: 16, 4>}, {pipeline_mode = #tpu.pipeline_mode<synchronous>, transform_indices = @transform_1, window_bounds = array<i64: 16, 128>}, {pipeline_mode = #tpu.pipeline_mode<synchronous>, transform_indices = @transform_2, window_bounds = array<i64: 4, 128>}, {pipeline_mode = #tpu.pipeline_mode<synchronous>, transform_indices = @transform_3, window_bounds = array<i64: 1, 128>}, {pipeline_mode = #tpu.pipeline_mode<synchronous>, transform_indices = @transform_4, window_bounds = array<i64: 256, 128>}, {pipeline_mode = #tpu.pipeline_mode<synchronous>, transform_indices = @transform_5, window_bounds = array<i64: 1, 128>}, {pipeline_mode = #tpu.pipeline_mode<synchronous>, transform_indices = @transform_6, window_bounds = array<i64: 128, 256>}, {pipeline_mode = #tpu.pipeline_mode<synchronous>, transform_indices = @transform_7, window_bounds = array<i64: 1, 256>}, {pipeline_mode = #tpu.pipeline_mode<synchronous>, transform_indices = @transform_8, window_bounds = array<i64: 256, 256>}, {pipeline_mode = #tpu.pipeline_mode<synchronous>, transform_indices = @transform_9, window_bounds = array<i64: 1, 256>}, {pipeline_mode = #tpu.pipeline_mode<synchronous>, transform_indices = @transform_10, window_bounds = array<i64: 16, 128>}, {pipeline_mode = #tpu.pipeline_mode<synchronous>, transform_indices = @transform_11, window_bounds = array<i64: 16, 128>}]} {
    %c0 = arith.constant 0 : index
    %c0_0 = arith.constant 0 : index
    %0 = vector.load %arg1[%c0, %c0_0] : memref<16x4xf32, #tpu.memory_space<vmem>>, vector<16x4xf32>
    %cst = arith.constant 0.000000e+00 : f32
    %1 = vector.broadcast %cst : f32 to vector<16x128xf32>
    %c0_1 = arith.constant 0 : index
    %c0_2 = arith.constant 0 : index
    %2 = vector.load %arg4[%c0_1, %c0_2] : memref<1x128xf32, #tpu.memory_space<vmem>>, vector<1x128xf32>
    %3 = vector.broadcast %2 : vector<1x128xf32> to vector<16x128xf32>
    %4 = arith.addf %1, %3 : vector<16x128xf32>
    %5 = vector.extract_strided_slice %0 {offsets = [0, 0], sizes = [16, 1], strides = [1, 1]} : vector<16x4xf32> to vector<16x1xf32>
    %c0_3 = arith.constant 0 : index
    %c0_4 = arith.constant 0 : index
    %6 = vector.load %arg3[%c0_3, %c0_4] : memref<4x128xf32, #tpu.memory_space<vmem>>, vector<1x128xf32>
    %7 = vector.broadcast %5 : vector<16x1xf32> to vector<16x128xf32>
    %8 = vector.broadcast %6 : vector<1x128xf32> to vector<16x128xf32>
    %9 = arith.mulf %7, %8 : vector<16x128xf32>
    %10 = arith.addf %4, %9 : vector<16x128xf32>
    %11 = vector.extract_strided_slice %0 {offsets = [0, 1], sizes = [16, 1], strides = [1, 1]} : vector<16x4xf32> to vector<16x1xf32>
    %c1 = arith.constant 1 : index
    %c0_5 = arith.constant 0 : index
    %12 = vector.load %arg3[%c1, %c0_5] : memref<4x128xf32, #tpu.memory_space<vmem>>, vector<1x128xf32>
    %13 = vector.broadcast %11 : vector<16x1xf32> to vector<16x128xf32>
    %14 = vector.broadcast %12 : vector<1x128xf32> to vector<16x128xf32>
    %15 = arith.mulf %13, %14 : vector<16x128xf32>
    %16 = arith.addf %10, %15 : vector<16x128xf32>
    %17 = vector.extract_strided_slice %0 {offsets = [0, 2], sizes = [16, 1], strides = [1, 1]} : vector<16x4xf32> to vector<16x1xf32>
    %c2 = arith.constant 2 : index
    %c0_6 = arith.constant 0 : index
    %18 = vector.load %arg3[%c2, %c0_6] : memref<4x128xf32, #tpu.memory_space<vmem>>, vector<1x128xf32>
    %19 = vector.broadcast %17 : vector<16x1xf32> to vector<16x128xf32>
    %20 = vector.broadcast %18 : vector<1x128xf32> to vector<16x128xf32>
    %21 = arith.mulf %19, %20 : vector<16x128xf32>
    %22 = arith.addf %16, %21 : vector<16x128xf32>
    %23 = vector.extract_strided_slice %0 {offsets = [0, 3], sizes = [16, 1], strides = [1, 1]} : vector<16x4xf32> to vector<16x1xf32>
    %c3 = arith.constant 3 : index
    %c0_7 = arith.constant 0 : index
    %24 = vector.load %arg3[%c3, %c0_7] : memref<4x128xf32, #tpu.memory_space<vmem>>, vector<1x128xf32>
    %25 = vector.broadcast %23 : vector<16x1xf32> to vector<16x128xf32>
    %26 = vector.broadcast %24 : vector<1x128xf32> to vector<16x128xf32>
    %27 = arith.mulf %25, %26 : vector<16x128xf32>
    %28 = arith.addf %22, %27 : vector<16x128xf32>
    %cst_8 = arith.constant 0.000000e+00 : f32
    %29 = vector.broadcast %cst_8 : f32 to vector<16x128xf32>
    %30 = arith.maximumf %28, %29 : vector<16x128xf32>
    %c0_9 = arith.constant 0 : index
    %c0_10 = arith.constant 0 : index
    %31 = vector.load %arg2[%c0_9, %c0_10] : memref<16x128xf32, #tpu.memory_space<vmem>>, vector<16x128xf32>
    %32 = tpu.concatenate %30, %31 in 1 : vector<16x128xf32>, vector<16x128xf32> -> vector<16x256xf32>
    %c0_11 = arith.constant 0 : index
    %c0_12 = arith.constant 0 : index
    %33 = vector.load %arg5[%c0_11, %c0_12] : memref<256x128xf32, #tpu.memory_space<vmem>>, vector<256x128xf32>
    %cst_13 = arith.constant dense<0.000000e+00> : vector<16x128xf32>
    %34 = tpu.matmul %32, %33, %cst_13 {dimension_numbers = #tpu.dot_dimension_numbers<[1], [0], [0], [1], [0, 0, 1, 1], [], []>} : vector<16x256xf32>, vector<256x128xf32>, vector<16x128xf32> -> vector<16x128xf32>
    %c0_14 = arith.constant 0 : index
    %c0_15 = arith.constant 0 : index
    %35 = vector.load %arg6[%c0_14, %c0_15] : memref<1x128xf32, #tpu.memory_space<vmem>>, vector<1x128xf32>
    %36 = vector.broadcast %35 : vector<1x128xf32> to vector<16x128xf32>
    %37 = arith.addf %34, %36 : vector<16x128xf32>
    %cst_16 = arith.constant 0.000000e+00 : f32
    %38 = vector.broadcast %cst_16 : f32 to vector<16x128xf32>
    %39 = arith.maximumf %37, %38 : vector<16x128xf32>
    %c0_17 = arith.constant 0 : index
    %c0_18 = arith.constant 0 : index
    %40 = vector.load %arg7[%c0_17, %c0_18] : memref<128x256xf32, #tpu.memory_space<vmem>>, vector<128x256xf32>
    %cst_19 = arith.constant dense<0.000000e+00> : vector<16x256xf32>
    %41 = tpu.matmul %39, %40, %cst_19 {dimension_numbers = #tpu.dot_dimension_numbers<[1], [0], [0], [1], [0, 0, 1, 1], [], []>} : vector<16x128xf32>, vector<128x256xf32>, vector<16x256xf32> -> vector<16x256xf32>
    %c0_20 = arith.constant 0 : index
    %c0_21 = arith.constant 0 : index
    %42 = vector.load %arg8[%c0_20, %c0_21] : memref<1x256xf32, #tpu.memory_space<vmem>>, vector<1x256xf32>
    %43 = vector.broadcast %42 : vector<1x256xf32> to vector<16x256xf32>
    %44 = arith.addf %41, %43 : vector<16x256xf32>
    %cst_22 = arith.constant 0.000000e+00 : f32
    %45 = vector.broadcast %cst_22 : f32 to vector<16x256xf32>
    %46 = arith.maximumf %44, %45 : vector<16x256xf32>
    %c0_23 = arith.constant 0 : index
    %c0_24 = arith.constant 0 : index
    %47 = vector.load %arg9[%c0_23, %c0_24] : memref<256x256xf32, #tpu.memory_space<vmem>>, vector<256x256xf32>
    %cst_25 = arith.constant dense<0.000000e+00> : vector<16x256xf32>
    %48 = tpu.matmul %46, %47, %cst_25 {dimension_numbers = #tpu.dot_dimension_numbers<[1], [0], [0], [1], [0, 0, 1, 1], [], []>} : vector<16x256xf32>, vector<256x256xf32>, vector<16x256xf32> -> vector<16x256xf32>
    %c0_26 = arith.constant 0 : index
    %c0_27 = arith.constant 0 : index
    %49 = vector.load %arg10[%c0_26, %c0_27] : memref<1x256xf32, #tpu.memory_space<vmem>>, vector<1x256xf32>
    %50 = vector.broadcast %49 : vector<1x256xf32> to vector<16x256xf32>
    %51 = arith.addf %48, %50 : vector<16x256xf32>
    %52 = vector.extract_strided_slice %51 {offsets = [0, 0], sizes = [16, 128], strides = [1, 1]} : vector<16x256xf32> to vector<16x128xf32>
    %53 = arith.mulf %52, %52 : vector<16x128xf32>
    %cst_28 = arith.constant dense<0.000000e+00> : vector<16xf32>
    %54 = vector.multi_reduction <add>, %53, %cst_28 [1] : vector<16x128xf32> to vector<16xf32>
    %55 = vector.shape_cast %54 : vector<16xf32> to vector<16x1xf32>
    %cst_29 = arith.constant 1.000000e-24 : f32
    %56 = vector.broadcast %cst_29 : f32 to vector<16x1xf32>
    %57 = arith.maximumf %55, %56 : vector<16x1xf32>
    %58 = math.rsqrt %57 : vector<16x1xf32>
    %59 = vector.broadcast %58 : vector<16x1xf32> to vector<16x128xf32>
    %60 = arith.mulf %52, %59 : vector<16x128xf32>
    %c0_30 = arith.constant 0 : index
    %c0_31 = arith.constant 0 : index
    %61 = vector.load %arg11[%c0_30, %c0_31] : memref<16x128xf32, #tpu.memory_space<vmem>>, vector<16x128xf32>
    tpu.vector_store %arg11[%c0_30, %c0_31], %60 {strides = array<i32>} : memref<16x128xf32, #tpu.memory_space<vmem>>, vector<16x128xf32>,
    %62 = vector.extract_strided_slice %51 {offsets = [0, 128], sizes = [16, 128], strides = [1, 1]} : vector<16x256xf32> to vector<16x128xf32>
    %cst_32 = arith.constant dense<0xFF800000> : vector<16xf32>
    %63 = vector.multi_reduction <maximumf>, %62, %cst_32 [1] : vector<16x128xf32> to vector<16xf32>
    %64 = vector.shape_cast %63 : vector<16xf32> to vector<16x1xf32>
    %65 = vector.broadcast %64 : vector<16x1xf32> to vector<16x128xf32>
    %66 = arith.subf %62, %65 : vector<16x128xf32>
    %67 = math.exp %66 : vector<16x128xf32>
    %cst_33 = arith.constant dense<0.000000e+00> : vector<16xf32>
    %68 = vector.multi_reduction <add>, %67, %cst_33 [1] : vector<16x128xf32> to vector<16xf32>
    %69 = vector.shape_cast %68 : vector<16xf32> to vector<16x1xf32>
    %70 = vector.broadcast %69 : vector<16x1xf32> to vector<16x128xf32>
    %71 = arith.divf %67, %70 : vector<16x128xf32>
    %c0_34 = arith.constant 0 : index
    %c0_35 = arith.constant 0 : index
    %72 = vector.load %arg12[%c0_34, %c0_35] : memref<16x128xf32, #tpu.memory_space<vmem>>, vector<16x128xf32>
    tpu.vector_store %arg12[%c0_34, %c0_35], %71 {strides = array<i32>} : memref<16x128xf32, #tpu.memory_space<vmem>>, vector<16x128xf32>,
    return
  }
  func.func @transform_0(%arg0: i32) -> (i32, i32) {
    %c0_i32 = arith.constant 0 : i32
    %c0_i32_0 = arith.constant 0 : i32
    %c0_i32_1 = arith.constant 0 : i32
    return %c0_i32, %c0_i32_0 : i32, i32
  }
  func.func @transform_1(%arg0: i32) -> (i32, i32) {
    %c0_i32 = arith.constant 0 : i32
    %c0_i32_0 = arith.constant 0 : i32
    %c0_i32_1 = arith.constant 0 : i32
    return %c0_i32, %c0_i32_0 : i32, i32
  }
  func.func @transform_2(%arg0: i32) -> (i32, i32) {
    %c0_i32 = arith.constant 0 : i32
    %c0_i32_0 = arith.constant 0 : i32
    %c0_i32_1 = arith.constant 0 : i32
    return %c0_i32, %c0_i32_0 : i32, i32
  }
  func.func @transform_3(%arg0: i32) -> (i32, i32) {
    %c0_i32 = arith.constant 0 : i32
    %c0_i32_0 = arith.constant 0 : i32
    %c0_i32_1 = arith.constant 0 : i32
    return %c0_i32, %c0_i32_0 : i32, i32
  }
  func.func @transform_4(%arg0: i32) -> (i32, i32) {
    %c0_i32 = arith.constant 0 : i32
    %c0_i32_0 = arith.constant 0 : i32
    %c0_i32_1 = arith.constant 0 : i32
    return %c0_i32, %c0_i32_0 : i32, i32
  }
  func.func @transform_5(%arg0: i32) -> (i32, i32) {
    %c0_i32 = arith.constant 0 : i32
    %c0_i32_0 = arith.constant 0 : i32
    %c0_i32_1 = arith.constant 0 : i32
    return %c0_i32, %c0_i32_0 : i32, i32
  }
  func.func @transform_6(%arg0: i32) -> (i32, i32) {
    %c0_i32 = arith.constant 0 : i32
    %c0_i32_0 = arith.constant 0 : i32
    %c0_i32_1 = arith.constant 0 : i32
    return %c0_i32, %c0_i32_0 : i32, i32
  }
  func.func @transform_7(%arg0: i32) -> (i32, i32) {
    %c0_i32 = arith.constant 0 : i32
    %c0_i32_0 = arith.constant 0 : i32
    %c0_i32_1 = arith.constant 0 : i32
    return %c0_i32, %c0_i32_0 : i32, i32
  }
  func.func @transform_8(%arg0: i32) -> (i32, i32) {
    %c0_i32 = arith.constant 0 : i32
    %c0_i32_0 = arith.constant 0 : i32
    %c0_i32_1 = arith.constant 0 : i32
    return %c0_i32, %c0_i32_0 : i32, i32
  }
  func.func @transform_9(%arg0: i32) -> (i32, i32) {
    %c0_i32 = arith.constant 0 : i32
    %c0_i32_0 = arith.constant 0 : i32
    %c0_i32_1 = arith.constant 0 : i32
    return %c0_i32, %c0_i32_0 : i32, i32
  }
  func.func @transform_10(%arg0: i32) -> (i32, i32) {
    %c0_i32 = arith.constant 0 : i32
    %c0_i32_0 = arith.constant 0 : i32
    %c0_i32_1 = arith.constant 0 : i32
    return %c0_i32, %c0_i32_0 : i32, i32
  }
  func.func @transform_11(%arg0: i32) -> (i32, i32) {
    %c0_i32 = arith.constant 0 : i32
    %c0_i32_0 = arith.constant 0 : i32
    %c0_i32_1 = arith.constant 0 : i32
    return %c0_i32, %c0_i32_0 : i32, i32
  }
}

</mosaic_0001>

<llo_original>
// kernel: t_network_forward.1
$region0: #{t_network_forward.1}
  #allocation0 [shape = 'u32[]', space=smem, size = 0x4, offset = 0x4, fixed_abs, tag = 'smem constant byte address 0x4 - core index']
  #allocation1 [shape = 'u32[144,128]{1,0:T(1,128)}', space=vmem, size = 0x12000, scoped, tag = 'internal scratch']
  %s0 = inlined_call_operand.vmem [shape: f32[16,4], index: 0, kind: input, shape index: {}]
  %s1 = inlined_call_operand.vmem [shape: f32[16,128], index: 1, kind: input, shape index: {}]
  %s2 = inlined_call_operand.vmem [shape: f32[4,128], index: 2, kind: input, shape index: {}]
  %s3 = inlined_call_operand.vmem [shape: f32[1,128], index: 3, kind: input, shape index: {}]
  %s4 = inlined_call_operand.vmem [shape: f32[256,128], index: 4, kind: input, shape index: {}]
  %s5 = inlined_call_operand.vmem [shape: f32[1,128], index: 5, kind: input, shape index: {}]
  %s6 = inlined_call_operand.vmem [shape: f32[128,256], index: 6, kind: input, shape index: {}]
  %s7 = inlined_call_operand.vmem [shape: f32[1,256], index: 7, kind: input, shape index: {}]
  %s8 = inlined_call_operand.vmem [shape: f32[256,256], index: 8, kind: input, shape index: {}]
  %s9 = inlined_call_operand.vmem [shape: f32[1,256], index: 9, kind: input, shape index: {}]
  %s10 = inlined_call_operand.vmem [shape: f32[16,128], index: 10, kind: output, shape index: {0}]
  %s11 = inlined_call_operand.vmem [shape: f32[16,128], index: 11, kind: output, shape index: {1}]
  %12 = xla_tuple %s10, %s11
  %s13 = sld [smem:[#allocation0]]
  $region58: #{t_network_forward.1} parent=0
    _
  %s15 = ssub.s32 1, %s13
  %s16 = scalar_select 0, %s15, %s13
  // Predicated region
  $region2: #{t_network_forward.1} parent=0 // pred_check
    _
  $region3: #{t_network_forward.1} parent=0 // pred_check_branch
    %18 = sbr.rel (0) target = $region5
  $region4: #{t_network_forward.1} parent=0 // pred_region
    _
  $region5: #{t_network_forward.1} parent=0 // pred_fallthru
    _
  // Predicated region
  $region6: #{t_network_forward.1} parent=0 // pred_check
    _
  $region7: #{t_network_forward.1} parent=0 // pred_check_branch
    %20 = sbr.rel (0) target = $region9
  $region8: #{t_network_forward.1} parent=0 // pred_region
    _
  $region9: #{t_network_forward.1} parent=0 // pred_fallthru
    _
  // Predicated region
  $region10: #{t_network_forward.1} parent=0 // pred_check
    _
  $region11: #{t_network_forward.1} parent=0 // pred_check_branch
    %22 = sbr.rel (0) target = $region13
  $region12: #{t_network_forward.1} parent=0 // pred_region
    _
  $region13: #{t_network_forward.1} parent=0 // pred_fallthru
    _
  // Predicated region
  $region14: #{t_network_forward.1} parent=0 // pred_check
    _
  $region15: #{t_network_forward.1} parent=0 // pred_check_branch
    %24 = sbr.rel (0) target = $region17
  $region16: #{t_network_forward.1} parent=0 // pred_region
    _
  $region17: #{t_network_forward.1} parent=0 // pred_fallthru
    _
  // Predicated region
  $region18: #{t_network_forward.1} parent=0 // pred_check
    _
  $region19: #{t_network_forward.1} parent=0 // pred_check_branch
    %26 = sbr.rel (0) target = $region21
  $region20: #{t_network_forward.1} parent=0 // pred_region
    _
  $region21: #{t_network_forward.1} parent=0 // pred_fallthru
    _
  // Predicated region
  $region22: #{t_network_forward.1} parent=0 // pred_check
    _
  $region23: #{t_network_forward.1} parent=0 // pred_check_branch
    %28 = sbr.rel (0) target = $region25
  $region24: #{t_network_forward.1} parent=0 // pred_region
    _
  $region25: #{t_network_forward.1} parent=0 // pred_fallthru
    _
  // Predicated region
  $region26: #{t_network_forward.1} parent=0 // pred_check
    _
  $region27: #{t_network_forward.1} parent=0 // pred_check_branch
    %30 = sbr.rel (0) target = $region29
  $region28: #{t_network_forward.1} parent=0 // pred_region
    _
  $region29: #{t_network_forward.1} parent=0 // pred_fallthru
    _
  // Predicated region
  $region30: #{t_network_forward.1} parent=0 // pred_check
    _
  $region31: #{t_network_forward.1} parent=0 // pred_check_branch
    %32 = sbr.rel (0) target = $region33
  $region32: #{t_network_forward.1} parent=0 // pred_region
    _
  $region33: #{t_network_forward.1} parent=0 // pred_fallthru
    _
  // Predicated region
  $region34: #{t_network_forward.1} parent=0 // pred_check
    _
  $region35: #{t_network_forward.1} parent=0 // pred_check_branch
    %34 = sbr.rel (0) target = $region37
  $region36: #{t_network_forward.1} parent=0 // pred_region
    _
  $region37: #{t_network_forward.1} parent=0 // pred_fallthru
    _
  // Predicated region
  $region38: #{t_network_forward.1} parent=0 // pred_check
    _
  $region39: #{t_network_forward.1} parent=0 // pred_check_branch
    %36 = sbr.rel (0) target = $region41
  $region40: #{t_network_forward.1} parent=0 // pred_region
    _
  $region41: #{t_network_forward.1} parent=0 // pred_fallthru
    _
  %v37 = vld [vmem:[%s0] sm:$0xff]
  %v38 = vld [vmem:[%s0 + $0x8] sm:$0xff]
  %v39 = vld [vmem:[%s3] sm:$0x1]
  %v41 = vlaneseq
  %v42 = vshrl.u32 %v41, 7
  %v43 = vsub.s32 0, %v42
  %v44 = vrot.slane %v39, %v43
  %v46 = vadd.f32 %v44, 0.0
  %v47 = vld [vmem:[%s2] sm:$0x1]
  %49 = vset.pattern.permute.xlu0 0
  %50 = vperm.xlu0 %49, %v37
  %v51 = vpop.permute.xlu0 %50
  %54 = vset.pattern.permute.xlu0 0
  %55 = vperm.xlu0 %54, %v38
  %v56 = vpop.permute.xlu0 %55
  %v58 = vlaneseq
  %v59 = vshrl.u32 %v58, 7
  %v60 = vsub.s32 0, %v59
  %v61 = vrot.slane %v47, %v60
  %v62 = vmul.f32 %v51, %v61
  %v63 = vmul.f32 %v56, %v61
  %v64 = vadd.f32 %v46, %v62
  %v65 = vadd.f32 %v46, %v63
  %v66 = vld [vmem:[%s2 + $0x1] sm:$0x1]
  %67 = vset.pattern.permute.xlu0 1
  %68 = vperm.xlu0 %67, %v37
  %v69 = vpop.permute.xlu0 %68
  %71 = vset.pattern.permute.xlu0 1
  %72 = vperm.xlu0 %71, %v38
  %v73 = vpop.permute.xlu0 %72
  %v75 = vlaneseq
  %v76 = vshrl.u32 %v75, 7
  %v77 = vsub.s32 0, %v76
  %v78 = vrot.slane %v66, %v77
  %v79 = vmul.f32 %v69, %v78
  %v80 = vmul.f32 %v73, %v78
  %v81 = vadd.f32 %v64, %v79
  %v82 = vadd.f32 %v65, %v80
  %v83 = vld [vmem:[%s2 + $0x2] sm:$0x1]
  %84 = vset.pattern.permute.xlu0 2
  %85 = vperm.xlu0 %84, %v37
  %v86 = vpop.permute.xlu0 %85
  %88 = vset.pattern.permute.xlu0 2
  %89 = vperm.xlu0 %88, %v38
  %v90 = vpop.permute.xlu0 %89
  %v92 = vlaneseq
  %v93 = vshrl.u32 %v92, 7
  %v94 = vsub.s32 0, %v93
  %v95 = vrot.slane %v83, %v94
  %v96 = vmul.f32 %v86, %v95
  %v97 = vmul.f32 %v90, %v95
  %v98 = vadd.f32 %v81, %v96
  %v99 = vadd.f32 %v82, %v97
  %v100 = vld [vmem:[%s2 + $0x3] sm:$0x1]
  %101 = vset.pattern.permute.xlu0 3
  %102 = vperm.xlu0 %101, %v37
  %v103 = vpop.permute.xlu0 %102
  %105 = vset.pattern.permute.xlu0 3
  %106 = vperm.xlu0 %105, %v38
  %v107 = vpop.permute.xlu0 %106
  %v109 = vlaneseq
  %v110 = vshrl.u32 %v109, 7
  %v111 = vsub.s32 0, %v110
  %v112 = vrot.slane %v100, %v111
  %v113 = vmul.f32 %v103, %v112
  %v114 = vmul.f32 %v107, %v112
  %v115 = vadd.f32 %v98, %v113
  %v116 = vadd.f32 %v99, %v114
  %v117 = vmax.f32 %v115, 0.0
  %v118 = vmax.f32 %v116, 0.0
  %v119 = vld [vmem:[%s1] sm:$0xff]
  %v120 = vld [vmem:[%s1 + $0x8] sm:$0xff]
  %v121 = vld [vmem:[%s4] sm:$0xff]
  %v122 = vld [vmem:[%s4 + $0x8] sm:$0xff]
  %v123 = vld [vmem:[%s4 + $0x10] sm:$0xff]
  %v124 = vld [vmem:[%s4 + $0x18] sm:$0xff]
  %v125 = vld [vmem:[%s4 + $0x20] sm:$0xff]
  %v126 = vld [vmem:[%s4 + $0x28] sm:$0xff]
  %v127 = vld [vmem:[%s4 + $0x30] sm:$0xff]
  %v128 = vld [vmem:[%s4 + $0x38] sm:$0xff]
  %v129 = vld [vmem:[%s4 + $0x40] sm:$0xff]
  %v130 = vld [vmem:[%s4 + $0x48] sm:$0xff]
  %v131 = vld [vmem:[%s4 + $0x50] sm:$0xff]
  %v132 = vld [vmem:[%s4 + $0x58] sm:$0xff]
  %v133 = vld [vmem:[%s4 + $0x60] sm:$0xff]
  %v134 = vld [vmem:[%s4 + $0x68] sm:$0xff]
  %v135 = vld [vmem:[%s4 + $0x70] sm:$0xff]
  %v136 = vld [vmem:[%s4 + $0x78] sm:$0xff]
  %v137 = vld [vmem:[%s4 + $0x80] sm:$0xff]
  %v138 = vld [vmem:[%s4 + $0x88] sm:$0xff]
  %v139 = vld [vmem:[%s4 + $0x90] sm:$0xff]
  %v140 = vld [vmem:[%s4 + $0x98] sm:$0xff]
  %v141 = vld [vmem:[%s4 + $0xa0] sm:$0xff]
  %v142 = vld [vmem:[%s4 + $0xa8] sm:$0xff]
  %v143 = vld [vmem:[%s4 + $0xb0] sm:$0xff]
  %v144 = vld [vmem:[%s4 + $0xb8] sm:$0xff]
  %v145 = vld [vmem:[%s4 + $0xc0] sm:$0xff]
  %v146 = vld [vmem:[%s4 + $0xc8] sm:$0xff]
  %v147 = vld [vmem:[%s4 + $0xd0] sm:$0xff]
  %v148 = vld [vmem:[%s4 + $0xd8] sm:$0xff]
  %v149 = vld [vmem:[%s4 + $0xe0] sm:$0xff]
  %v150 = vld [vmem:[%s4 + $0xe8] sm:$0xff]
  %v151 = vld [vmem:[%s4 + $0xf0] sm:$0xff]
  %v152 = vld [vmem:[%s4 + $0xf8] sm:$0xff]
  %v153 = vld [vmem:[%s5] sm:$0x1]
  %v155 = vlaneseq
  %v156 = vshrl.u32 %v155, 7
  %v157 = vsub.s32 0, %v156
  %v158 = vrot.slane %v153, %v157
  %160 = vmatprep.subr.mxu0 0.0
  %161 = vmatpush1.msra.mxu0 %v121
  %162 = vmatprep.subr.mxu0 0.0
  %163 = vmatpush1.msra.mxu0 %v122
  %164 = vmatprep.subr.mxu0 0.0
  %165 = vmatpush1.msra.mxu0 %v123
  %166 = vmatprep.subr.mxu0 0.0
  %167 = vmatpush1.msra.mxu0 %v124
  %168 = vmatprep.subr.mxu0 0.0
  %169 = vmatpush1.msra.mxu0 %v125
  %170 = vmatprep.subr.mxu0 0.0
  %171 = vmatpush1.msra.mxu0 %v126
  %172 = vmatprep.subr.mxu0 0.0
  %173 = vmatpush1.msra.mxu0 %v127
  %174 = vmatprep.subr.mxu0 0.0
  %175 = vmatpush1.msra.mxu0 %v128
  %176 = vmatprep.subr.mxu0 0.0
  %177 = vmatpush1.msra.mxu0 %v129
  %178 = vmatprep.subr.mxu0 0.0
  %179 = vmatpush1.msra.mxu0 %v130
  %180 = vmatprep.subr.mxu0 0.0
  %181 = vmatpush1.msra.mxu0 %v131
  %182 = vmatprep.subr.mxu0 0.0
  %183 = vmatpush1.msra.mxu0 %v132
  %184 = vmatprep.subr.mxu0 0.0
  %185 = vmatpush1.msra.mxu0 %v133
  %186 = vmatprep.subr.mxu0 0.0
  %187 = vmatpush1.msra.mxu0 %v134
  %188 = vmatprep.subr.mxu0 0.0
  %189 = vmatpush1.msra.mxu0 %v135
  %190 = vmatprep.subr.mxu0 0.0
  %191 = vmatpush1.msra.mxu0 %v136
  %192 = vmatprep.subr.mxu0 0.0
  %193 = vmatpush1.msra.mxu0 %v137
  %194 = vmatprep.subr.mxu0 0.0
  %195 = vmatpush1.msra.mxu0 %v138
  %196 = vmatprep.subr.mxu0 0.0
  %197 = vmatpush1.msra.mxu0 %v139
  %198 = vmatprep.subr.mxu0 0.0
  %199 = vmatpush1.msra.mxu0 %v140
  %200 = vmatprep.subr.mxu0 0.0
  %201 = vmatpush1.msra.mxu0 %v141
  %202 = vmatprep.subr.mxu0 0.0
  %203 = vmatpush1.msra.mxu0 %v142
  %204 = vmatprep.subr.mxu0 0.0
  %205 = vmatpush1.msra.mxu0 %v143
  %206 = vmatprep.subr.mxu0 0.0
  %207 = vmatpush1.msra.mxu0 %v144
  %208 = vmatprep.subr.mxu0 0.0
  %209 = vmatpush1.msra.mxu0 %v145
  %210 = vmatprep.subr.mxu0 0.0
  %211 = vmatpush1.msra.mxu0 %v146
  %212 = vmatprep.subr.mxu0 0.0
  %213 = vmatpush1.msra.mxu0 %v147
  %214 = vmatprep.subr.mxu0 0.0
  %215 = vmatpush1.msra.mxu0 %v148
  %216 = vmatprep.subr.mxu0 0.0
  %217 = vmatpush1.msra.mxu0 %v149
  %218 = vmatprep.subr.mxu0 0.0
  %219 = vmatpush1.msra.mxu0 %v150
  %220 = vmatprep.subr.mxu0 0.0
  %221 = vmatpush1.msra.mxu0 %v151
  %222 = vmatprep.subr.mxu0 0.0
  %223 = vmatpush1.msra.mxu0 %v152
  %224 = vmatprep.mubr.f32.mxu0 %v119
  %225 = vmatmul.mubr.f32.gmra.mrb[0].mxu0 %v117
  %v226 = vpop.f32.mrb[0].mxu0
  %v227 = vadd.f32 %v158, %v226
  %v228 = vpop.f32.mrb[0].mxu0
  %229 = vmatprep.mubr.f32.mxu0 %v120
  %230 = vmatmul.mubr.f32.gmra.mrb[0].mxu0 %v118
  %v231 = vpop.f32.mrb[0].mxu0
  %v232 = vadd.f32 %v158, %v231
  %v233 = vpop.f32.mrb[0].mxu0
  %234 = vdwg.mxu0
  %v235 = vmax.f32 %v227, 0.0
  %v236 = vmax.f32 %v232, 0.0
  %v237 = vld [vmem:[%s6] sm:$0xff]
  %v238 = vld [vmem:[%s6 + $0x8] sm:$0xff]
  %v239 = vld [vmem:[%s6 + $0x10] sm:$0xff]
  %v240 = vld [vmem:[%s6 + $0x18] sm:$0xff]
  %v241 = vld [vmem:[%s6 + $0x20] sm:$0xff]
  %v242 = vld [vmem:[%s6 + $0x28] sm:$0xff]
  %v243 = vld [vmem:[%s6 + $0x30] sm:$0xff]
  %v244 = vld [vmem:[%s6 + $0x38] sm:$0xff]
  %v245 = vld [vmem:[%s6 + $0x40] sm:$0xff]
  %v246 = vld [vmem:[%s6 + $0x48] sm:$0xff]
  %v247 = vld [vmem:[%s6 + $0x50] sm:$0xff]
  %v248 = vld [vmem:[%s6 + $0x58] sm:$0xff]
  %v249 = vld [vmem:[%s6 + $0x60] sm:$0xff]
  %v250 = vld [vmem:[%s6 + $0x68] sm:$0xff]
  %v251 = vld [vmem:[%s6 + $0x70] sm:$0xff]
  %v252 = vld [vmem:[%s6 + $0x78] sm:$0xff]
  %v253 = vld [vmem:[%s6 + $0x80] sm:$0xff]
  %v254 = vld [vmem:[%s6 + $0x88] sm:$0xff]
  %v255 = vld [vmem:[%s6 + $0x90] sm:$0xff]
  %v256 = vld [vmem:[%s6 + $0x98] sm:$0xff]
  %v257 = vld [vmem:[%s6 + $0xa0] sm:$0xff]
  %v258 = vld [vmem:[%s6 + $0xa8] sm:$0xff]
  %v259 = vld [vmem:[%s6 + $0xb0] sm:$0xff]
  %v260 = vld [vmem:[%s6 + $0xb8] sm:$0xff]
  %v261 = vld [vmem:[%s6 + $0xc0] sm:$0xff]
  %v262 = vld [vmem:[%s6 + $0xc8] sm:$0xff]
  %v263 = vld [vmem:[%s6 + $0xd0] sm:$0xff]
  %v264 = vld [vmem:[%s6 + $0xd8] sm:$0xff]
  %v265 = vld [vmem:[%s6 + $0xe0] sm:$0xff]
  %v266 = vld [vmem:[%s6 + $0xe8] sm:$0xff]
  %v267 = vld [vmem:[%s6 + $0xf0] sm:$0xff]
  %v268 = vld [vmem:[%s6 + $0xf8] sm:$0xff]
  %v269 = vld [vmem:[%s7] sm:$0x3]
  %v271 = vlaneseq
  %v272 = vshrl.u32 %v271, 7
  %v273 = vsub.s32 0, %v272
  %v274 = vrot.slane %v269, %v273
  %v275 = vlaneseq
  %v276 = vshrl.u32 %v275, 7
  %v277 = vsub.s32 1, %v276
  %v278 = vrot.slane %v269, %v277
  %281 = vmatprep.subr.mxu0 %v238
  %282 = vmatpush1.msra.mxu0 %v237
  %283 = vmatprep.subr.mxu0 %v240
  %284 = vmatpush1.msra.mxu0 %v239
  %285 = vmatprep.subr.mxu0 %v242
  %286 = vmatpush1.msra.mxu0 %v241
  %287 = vmatprep.subr.mxu0 %v244
  %288 = vmatpush1.msra.mxu0 %v243
  %289 = vmatprep.subr.mxu0 %v246
  %290 = vmatpush1.msra.mxu0 %v245
  %291 = vmatprep.subr.mxu0 %v248
  %292 = vmatpush1.msra.mxu0 %v247
  %293 = vmatprep.subr.mxu0 %v250
  %294 = vmatpush1.msra.mxu0 %v249
  %295 = vmatprep.subr.mxu0 %v252
  %296 = vmatpush1.msra.mxu0 %v251
  %297 = vmatprep.subr.mxu0 %v254
  %298 = vmatpush1.msra.mxu0 %v253
  %299 = vmatprep.subr.mxu0 %v256
  %300 = vmatpush1.msra.mxu0 %v255
  %301 = vmatprep.subr.mxu0 %v258
  %302 = vmatpush1.msra.mxu0 %v257
  %303 = vmatprep.subr.mxu0 %v260
  %304 = vmatpush1.msra.mxu0 %v259
  %305 = vmatprep.subr.mxu0 %v262
  %306 = vmatpush1.msra.mxu0 %v261
  %307 = vmatprep.subr.mxu0 %v264
  %308 = vmatpush1.msra.mxu0 %v263
  %309 = vmatprep.subr.mxu0 %v266
  %310 = vmatpush1.msra.mxu0 %v265
  %311 = vmatprep.subr.mxu0 %v268
  %312 = vmatpush1.msra.mxu0 %v267
  %313 = vmatprep.subr.mxu0 0.0
  %314 = vmatpush1.msra.mxu0 0.0
  %315 = vmatprep.subr.mxu0 0.0
  %316 = vmatpush1.msra.mxu0 0.0
  %317 = vmatprep.subr.mxu0 0.0
  %318 = vmatpush1.msra.mxu0 0.0
  %319 = vmatprep.subr.mxu0 0.0
  %320 = vmatpush1.msra.mxu0 0.0
  %321 = vmatprep.subr.mxu0 0.0
  %322 = vmatpush1.msra.mxu0 0.0
  %323 = vmatprep.subr.mxu0 0.0
  %324 = vmatpush1.msra.mxu0 0.0
  %325 = vmatprep.subr.mxu0 0.0
  %326 = vmatpush1.msra.mxu0 0.0
  %327 = vmatprep.subr.mxu0 0.0
  %328 = vmatpush1.msra.mxu0 0.0
  %329 = vmatprep.subr.mxu0 0.0
  %330 = vmatpush1.msra.mxu0 0.0
  %331 = vmatprep.subr.mxu0 0.0
  %332 = vmatpush1.msra.mxu0 0.0
  %333 = vmatprep.subr.mxu0 0.0
  %334 = vmatpush1.msra.mxu0 0.0
  %335 = vmatprep.subr.mxu0 0.0
  %336 = vmatpush1.msra.mxu0 0.0
  %337 = vmatprep.subr.mxu0 0.0
  %338 = vmatpush1.msra.mxu0 0.0
  %339 = vmatprep.subr.mxu0 0.0
  %340 = vmatpush1.msra.mxu0 0.0
  %341 = vmatprep.subr.mxu0 0.0
  %342 = vmatpush1.msra.mxu0 0.0
  %343 = vmatprep.subr.mxu0 0.0
  %344 = vmatpush1.msra.mxu0 0.0
  %345 = vmatprep.mubr.f32.mxu0 0.0
  %346 = vmatmul.mubr.f32.gmra.mrb[0].mxu0 %v235
  %v347 = vpop.f32.mrb[0].mxu0
  %v348 = vadd.f32 %v274, %v347
  %v349 = vpop.f32.mrb[0].mxu0
  %v350 = vadd.f32 %v278, %v349
  %351 = vmatprep.mubr.f32.mxu0 0.0
  %352 = vmatmul.mubr.f32.gmra.mrb[0].mxu0 %v236
  %v353 = vpop.f32.mrb[0].mxu0
  %v354 = vadd.f32 %v274, %v353
  %v355 = vpop.f32.mrb[0].mxu0
  %v356 = vadd.f32 %v278, %v355
  %357 = vdwg.mxu0
  %v358 = vmax.f32 %v348, 0.0
  %v359 = vmax.f32 %v350, 0.0
  %v360 = vmax.f32 %v354, 0.0
  %v361 = vmax.f32 %v356, 0.0
  %v362 = vld [vmem:[%s8] sm:$0xff]
  %v363 = vld [vmem:[%s8 + $0x8] sm:$0xff]
  %v364 = vld [vmem:[%s8 + $0x10] sm:$0xff]
  %v365 = vld [vmem:[%s8 + $0x18] sm:$0xff]
  %v366 = vld [vmem:[%s8 + $0x20] sm:$0xff]
  %v367 = vld [vmem:[%s8 + $0x28] sm:$0xff]
  %v368 = vld [vmem:[%s8 + $0x30] sm:$0xff]
  %v369 = vld [vmem:[%s8 + $0x38] sm:$0xff]
  %v370 = vld [vmem:[%s8 + $0x40] sm:$0xff]
  %v371 = vld [vmem:[%s8 + $0x48] sm:$0xff]
  %v372 = vld [vmem:[%s8 + $0x50] sm:$0xff]
  %v373 = vld [vmem:[%s8 + $0x58] sm:$0xff]
  %v374 = vld [vmem:[%s8 + $0x60] sm:$0xff]
  %v375 = vld [vmem:[%s8 + $0x68] sm:$0xff]
  %v376 = vld [vmem:[%s8 + $0x70] sm:$0xff]
  %v377 = vld [vmem:[%s8 + $0x78] sm:$0xff]
  %v378 = vld [vmem:[%s8 + $0x80] sm:$0xff]
  %v379 = vld [vmem:[%s8 + $0x88] sm:$0xff]
  %v380 = vld [vmem:[%s8 + $0x90] sm:$0xff]
  %v381 = vld [vmem:[%s8 + $0x98] sm:$0xff]
  %v382 = vld [vmem:[%s8 + $0xa0] sm:$0xff]
  %v383 = vld [vmem:[%s8 + $0xa8] sm:$0xff]
  %v384 = vld [vmem:[%s8 + $0xb0] sm:$0xff]
  %v385 = vld [vmem:[%s8 + $0xb8] sm:$0xff]
  %v386 = vld [vmem:[%s8 + $0xc0] sm:$0xff]
  %v387 = vld [vmem:[%s8 + $0xc8] sm:$0xff]
  %v388 = vld [vmem:[%s8 + $0xd0] sm:$0xff]
  %v389 = vld [vmem:[%s8 + $0xd8] sm:$0xff]
  %v390 = vld [vmem:[%s8 + $0xe0] sm:$0xff]
  %v391 = vld [vmem:[%s8 + $0xe8] sm:$0xff]
  %v392 = vld [vmem:[%s8 + $0xf0] sm:$0xff]
  %v393 = vld [vmem:[%s8 + $0xf8] sm:$0xff]
  %v394 = vld [vmem:[%s8 + $0x100] sm:$0xff]
  %v395 = vld [vmem:[%s8 + $0x108] sm:$0xff]
  %v396 = vld [vmem:[%s8 + $0x110] sm:$0xff]
  %v397 = vld [vmem:[%s8 + $0x118] sm:$0xff]
  %v398 = vld [vmem:[%s8 + $0x120] sm:$0xff]
  %v399 = vld [vmem:[%s8 + $0x128] sm:$0xff]
  %v400 = vld [vmem:[%s8 + $0x130] sm:$0xff]
  %v401 = vld [vmem:[%s8 + $0x138] sm:$0xff]
  %v402 = vld [vmem:[%s8 + $0x140] sm:$0xff]
  %v403 = vld [vmem:[%s8 + $0x148] sm:$0xff]
  %v404 = vld [vmem:[%s8 + $0x150] sm:$0xff]
  %v405 = vld [vmem:[%s8 + $0x158] sm:$0xff]
  %v406 = vld [vmem:[%s8 + $0x160] sm:$0xff]
  %v407 = vld [vmem:[%s8 + $0x168] sm:$0xff]
  %v408 = vld [vmem:[%s8 + $0x170] sm:$0xff]
  %v409 = vld [vmem:[%s8 + $0x178] sm:$0xff]
  %v410 = vld [vmem:[%s8 + $0x180] sm:$0xff]
  %v411 = vld [vmem:[%s8 + $0x188] sm:$0xff]
  %v412 = vld [vmem:[%s8 + $0x190] sm:$0xff]
  %v413 = vld [vmem:[%s8 + $0x198] sm:$0xff]
  %v414 = vld [vmem:[%s8 + $0x1a0] sm:$0xff]
  %v415 = vld [vmem:[%s8 + $0x1a8] sm:$0xff]
  %v416 = vld [vmem:[%s8 + $0x1b0] sm:$0xff]
  %v417 = vld [vmem:[%s8 + $0x1b8] sm:$0xff]
  %v418 = vld [vmem:[%s8 + $0x1c0] sm:$0xff]
  %v419 = vld [vmem:[%s8 + $0x1c8] sm:$0xff]
  %v420 = vld [vmem:[%s8 + $0x1d0] sm:$0xff]
  %v421 = vld [vmem:[%s8 + $0x1d8] sm:$0xff]
  %v422 = vld [vmem:[%s8 + $0x1e0] sm:$0xff]
  %v423 = vld [vmem:[%s8 + $0x1e8] sm:$0xff]
  %v424 = vld [vmem:[%s8 + $0x1f0] sm:$0xff]
  %v425 = vld [vmem:[%s8 + $0x1f8] sm:$0xff]
  %v426 = vld [vmem:[%s9] sm:$0x3]
  %v428 = vlaneseq
  %v429 = vshrl.u32 %v428, 7
  %v430 = vsub.s32 0, %v429
  %v431 = vrot.slane %v426, %v430
  %v432 = vlaneseq
  %v433 = vshrl.u32 %v432, 7
  %v434 = vsub.s32 1, %v433
  %v435 = vrot.slane %v426, %v434
  %438 = vmatprep.subr.mxu0 %v363
  %439 = vmatpush1.msra.mxu0 %v362
  %440 = vmatprep.subr.mxu0 %v365
  %441 = vmatpush1.msra.mxu0 %v364
  %442 = vmatprep.subr.mxu0 %v367
  %443 = vmatpush1.msra.mxu0 %v366
  %444 = vmatprep.subr.mxu0 %v369
  %445 = vmatpush1.msra.mxu0 %v368
  %446 = vmatprep.subr.mxu0 %v371
  %447 = vmatpush1.msra.mxu0 %v370
  %448 = vmatprep.subr.mxu0 %v373
  %449 = vmatpush1.msra.mxu0 %v372
  %450 = vmatprep.subr.mxu0 %v375
  %451 = vmatpush1.msra.mxu0 %v374
  %452 = vmatprep.subr.mxu0 %v377
  %453 = vmatpush1.msra.mxu0 %v376
  %454 = vmatprep.subr.mxu0 %v379
  %455 = vmatpush1.msra.mxu0 %v378
  %456 = vmatprep.subr.mxu0 %v381
  %457 = vmatpush1.msra.mxu0 %v380
  %458 = vmatprep.subr.mxu0 %v383
  %459 = vmatpush1.msra.mxu0 %v382
  %460 = vmatprep.subr.mxu0 %v385
  %461 = vmatpush1.msra.mxu0 %v384
  %462 = vmatprep.subr.mxu0 %v387
  %463 = vmatpush1.msra.mxu0 %v386
  %464 = vmatprep.subr.mxu0 %v389
  %465 = vmatpush1.msra.mxu0 %v388
  %466 = vmatprep.subr.mxu0 %v391
  %467 = vmatpush1.msra.mxu0 %v390
  %468 = vmatprep.subr.mxu0 %v393
  %469 = vmatpush1.msra.mxu0 %v392
  %470 = vmatprep.subr.mxu0 %v395
  %471 = vmatpush1.msra.mxu0 %v394
  %472 = vmatprep.subr.mxu0 %v397
  %473 = vmatpush1.msra.mxu0 %v396
  %474 = vmatprep.subr.mxu0 %v399
  %475 = vmatpush1.msra.mxu0 %v398
  %476 = vmatprep.subr.mxu0 %v401
  %477 = vmatpush1.msra.mxu0 %v400
  %478 = vmatprep.subr.mxu0 %v403
  %479 = vmatpush1.msra.mxu0 %v402
  %480 = vmatprep.subr.mxu0 %v405
  %481 = vmatpush1.msra.mxu0 %v404
  %482 = vmatprep.subr.mxu0 %v407
  %483 = vmatpush1.msra.mxu0 %v406
  %484 = vmatprep.subr.mxu0 %v409
  %485 = vmatpush1.msra.mxu0 %v408
  %486 = vmatprep.subr.mxu0 %v411
  %487 = vmatpush1.msra.mxu0 %v410
  %488 = vmatprep.subr.mxu0 %v413
  %489 = vmatpush1.msra.mxu0 %v412
  %490 = vmatprep.subr.mxu0 %v415
  %491 = vmatpush1.msra.mxu0 %v414
  %492 = vmatprep.subr.mxu0 %v417
  %493 = vmatpush1.msra.mxu0 %v416
  %494 = vmatprep.subr.mxu0 %v419
  %495 = vmatpush1.msra.mxu0 %v418
  %496 = vmatprep.subr.mxu0 %v421
  %497 = vmatpush1.msra.mxu0 %v420
  %498 = vmatprep.subr.mxu0 %v423
  %499 = vmatpush1.msra.mxu0 %v422
  %500 = vmatprep.subr.mxu0 %v425
  %501 = vmatpush1.msra.mxu0 %v424
  %502 = vmatprep.mubr.f32.mxu0 %v359
  %503 = vmatmul.mubr.f32.gmra.mrb[0].mxu0 %v358
  %v504 = vpop.f32.mrb[0].mxu0
  %v505 = vadd.f32 %v431, %v504
  %v506 = vpop.f32.mrb[0].mxu0
  %v507 = vadd.f32 %v435, %v506
  %508 = vmatprep.mubr.f32.mxu0 %v361
  %509 = vmatmul.mubr.f32.gmra.mrb[0].mxu0 %v360
  %v510 = vpop.f32.mrb[0].mxu0
  %v511 = vadd.f32 %v431, %v510
  %v512 = vpop.f32.mrb[0].mxu0
  %v513 = vadd.f32 %v435, %v512
  %514 = vdwg.mxu0
  %v515 = vmul.f32 %v505, %v505
  %v516 = vmul.f32 %v511, %v511
  %517 = vadd.xlane.f32.xlu0 %v515
  %v518 = vpop.xlane.xlu0 %517
  %519 = vadd.xlane.f32.xlu0 %v516
  %v520 = vpop.xlane.xlu0 %519
  %v521 = vmax.f32 %v518, 1e-24
  %v522 = vmax.f32 %v520, 1e-24
  %v523 = vrsqrt.pop %v521
  %v524 = vrsqrt.pop %v522
  %v525 = vmul.f32 %v505, %v523
  %v526 = vmul.f32 %v511, %v524
  %527 = vst [vmem:[%s10] sm:$0xff] %v525
  %528 = vst [vmem:[%s10 + $0x8] sm:$0xff] %v526
  %529 = vmax.xlane.f32.xlu0 %v507
  %v530 = vpop.xlane.xlu0 %529
  %531 = vmax.xlane.f32.xlu0 %v513
  %v532 = vpop.xlane.xlu0 %531
  %v533 = vsub.f32 %v507, %v530
  %v534 = vsub.f32 %v513, %v532
  %v535 = vmul.f32 %v533, 1.442695
  %v536 = vpow.pop %v535
  %v537 = vmul.f32 %v534, 1.442695
  %v538 = vpow.pop %v537
  %539 = vadd.xlane.f32.xlu0 %v536
  %v540 = vpop.xlane.xlu0 %539
  %541 = vadd.xlane.f32.xlu0 %v538
  %v542 = vpop.xlane.xlu0 %541
  %v543 = vrcp.pop %v540
  %v544 = vmul.f32 %v536, %v543
  %v545 = vrcp.pop %v542
  %v546 = vmul.f32 %v538, %v545
  %547 = vst [vmem:[%s11] sm:$0xff] %v544
  %548 = vst [vmem:[%s11 + $0x8] sm:$0xff] %v546
  // Predicated region
  $region42: #{t_network_forward.1} parent=0 // pred_check
    _
  $region43: #{t_network_forward.1} parent=0 // pred_check_branch
    %550 = sbr.rel (0) target = $region45
  $region44: #{t_network_forward.1} parent=0 // pred_region
    _
  $region45: #{t_network_forward.1} parent=0 // pred_fallthru
    _
  // Predicated region
  $region46: #{t_network_forward.1} parent=0 // pred_check
    _
  $region47: #{t_network_forward.1} parent=0 // pred_check_branch
    %552 = sbr.rel (0) target = $region49
  $region48: #{t_network_forward.1} parent=0 // pred_region
    _
  $region49: #{t_network_forward.1} parent=0 // pred_fallthru
    _
  // Predicated region
  $region50: #{t_network_forward.1} parent=0 // pred_check
    _
  $region51: #{t_network_forward.1} parent=0 // pred_check_branch
    %554 = sbr.rel (0) target = $region53
  $region52: #{t_network_forward.1} parent=0 // pred_region
    _
  $region53: #{t_network_forward.1} parent=0 // pred_fallthru
    _
  // Predicated region
  $region54: #{t_network_forward.1} parent=0 // pred_check
    _
  $region55: #{t_network_forward.1} parent=0 // pred_check_branch
    %556 = sbr.rel (0) target = $region57
  $region56: #{t_network_forward.1} parent=0 // pred_region
    _
  $region57: #{t_network_forward.1} parent=0 // pred_fallthru
    _

</llo_original>
